<compile_context>
chip_gen: v5e
topology: v5e:2x2
jax: 0.10.0
libtpu: 0.0.40
codegen_flags: <defaults>
</compile_context>

<pallas_src>
import jax
import jax.numpy as jnp
from jax.experimental import pallas as pl
from jax.experimental.pallas import tpu as pltpu

_LANES = 128           # last dim: one full vreg lane width -> unmasked stores
_MAX_TILE_ROWS = 1024  # (1024, 128) f32 block = 512 KiB; in+out double-buffered = 2 MiB VMEM


def _elementwise_kernel(x_ref, o_ref):
    # Fused (x + 2) * 3 then square; all VPU, no cross-lane traffic.
    v = (x_ref[...] + 2.0) * 3.0
    o_ref[...] = v * v


def pt_module_forward(x):
    """Pallas implementation of PtModule.forward for NCHW inputs."""
    orig_shape = x.shape
    n = x.size

    # Flatten to a lane-dense 2D slab: last dim = 128 lanes, rows a multiple
    # of 8 sublanes.  Pad (cheap, sliced off afterwards) only if required.
    chunk = _LANES * 8
    padded = pl.cdiv(n, chunk) * chunk
    flat = x.reshape(-1)
    if padded != n:
        flat = jnp.pad(flat, (0, padded - n))
    rows = padded // _LANES
    x2d = flat.reshape(rows, _LANES)

    # Biggest row tile that fits the budget; rows and _MAX_TILE_ROWS are both
    # multiples of 8, so the block shape always satisfies the (8, 128) rule.
    tile_rows = min(_MAX_TILE_ROWS, rows)
    grid = (pl.cdiv(rows, tile_rows),)

    out2d = pl.pallas_call(
        _elementwise_kernel,
        out_shape=jax.ShapeDtypeStruct((rows, _LANES), x.dtype),
        grid=grid,
        in_specs=[
            pl.BlockSpec((tile_rows, _LANES), lambda i: (i, 0),
                         memory_space=pltpu.MemorySpace.VMEM),
        ],
        out_specs=pl.BlockSpec((tile_rows, _LANES), lambda i: (i, 0),
                               memory_space=pltpu.MemorySpace.VMEM),
        compiler_params=pltpu.CompilerParams(
            dimension_semantics=("parallel",),
        ),
    )(x2d)

    out_flat = out2d.reshape(-1)
    if padded != n:
        out_flat = out_flat[:n]
    return out_flat.reshape(orig_shape)


if __name__ == "__main__":
    key = jax.random.PRNGKey(0)
    x = jax.random.normal(key, (2, 4, 16, 16), dtype=jnp.float32)

    out = pt_module_forward(x)
    out = jax.block_until_ready(out)

    # Reference check against plain JAX semantics of the PyTorch module.
    ref = ((x + 2.0) * 3.0) ** 2
    assert out.shape == x.shape and out.dtype == x.dtype
    assert jnp.allclose(out, ref, rtol=1e-6, atol=1e-6)

    print("KERNEL_OK")
</pallas_src>

<mosaic_0001>
module attributes {stable_mosaic.version = 11 : i64} {
  func.func @_elementwise_kernel(%arg0: i32, %arg1: memref<16x128xf32, #tpu.memory_space<vmem>>, %arg2: memref<16x128xf32, #tpu.memory_space<vmem>>) attributes {dimension_semantics = [#tpu.dimension_semantics<parallel>], iteration_bounds = array<i64: 1>, scalar_prefetch = 0 : i64, scratch_operands = 0 : i64, tpu.core_type = #tpu.core_type<tc>, window_params = [{transform_indices = @transform_0, window_bounds = array<i64: 16, 128>}, {transform_indices = @transform_1, window_bounds = array<i64: 16, 128>}]} {
    %c0 = arith.constant 0 : index
    %c0_0 = arith.constant 0 : index
    %0 = vector.load %arg1[%c0, %c0_0] : memref<16x128xf32, #tpu.memory_space<vmem>>, vector<16x128xf32>
    %cst = arith.constant 2.000000e+00 : f32
    %1 = vector.broadcast %cst : f32 to vector<16x128xf32>
    %2 = arith.addf %0, %1 : vector<16x128xf32>
    %cst_1 = arith.constant 3.000000e+00 : f32
    %3 = vector.broadcast %cst_1 : f32 to vector<16x128xf32>
    %4 = arith.mulf %2, %3 : vector<16x128xf32>
    %5 = arith.mulf %4, %4 : vector<16x128xf32>
    %c0_2 = arith.constant 0 : index
    %c0_3 = arith.constant 0 : index
    %6 = vector.load %arg2[%c0_2, %c0_3] : memref<16x128xf32, #tpu.memory_space<vmem>>, vector<16x128xf32>
    tpu.vector_store %arg2[%c0_2, %c0_3], %5 {strides = array<i32>} : memref<16x128xf32, #tpu.memory_space<vmem>>, vector<16x128xf32>,
    return
  }
  func.func @transform_0(%arg0: i32) -> (i32, i32) {
    %c0_i32 = arith.constant 0 : i32
    %c0_i32_0 = arith.constant 0 : i32
    return %arg0, %c0_i32 : i32, i32
  }
  func.func @transform_1(%arg0: i32) -> (i32, i32) {
    %c0_i32 = arith.constant 0 : i32
    %c0_i32_0 = arith.constant 0 : i32
    return %arg0, %c0_i32 : i32, i32
  }
}

</mosaic_0001>

<llo_original>
// kernel: tpu_custom_call.1
$region0: #{tpu_custom_call.1}
  #allocation0 [shape = 'u32[]', space=smem, size = 0x4, offset = 0x4, fixed_abs, tag = 'smem constant byte address 0x4 - core index']
  #allocation1 [shape = 'u32[72,128]{1,0:T(1,128)}', space=vmem, size = 0x9000, scoped, tag = 'internal scratch']
  %s0 = inlined_call_operand.hbm [shape: f32[16,128], index: 0, kind: input, shape index: {}]
  %s1 = inlined_call_operand.hbm [shape: f32[16,128], index: 1, kind: output, shape index: {}]
  %s2 = sld [smem:[#allocation0]]
  $region18: #{tpu_custom_call.1} parent=0
    _
  %s4 = ssub.s32 1, %s2
  %s5 = scalar_select 0, %s4, %s2
  $region1: #{tpu_custom_call.1} parent=0
    #allocation2 [shape = 'u8[8192]{0}', space=vmem, size = 0x2000, scoped, tag = 'input window, operand 0, single buffered']
    #allocation3 [shape = 's32[1]{0}', space=sflag, size = 0x4, scoped, tag = 'scoped memory for tpu_custom_call.1']
    #allocation4 [shape = 's32[1]{0}', space=sflag, size = 0x4, scoped, tag = 'scoped memory for tpu_custom_call.1']
    #allocation5 [shape = 'u8[8192]{0}', space=vmem, size = 0x2000, scoped, tag = 'output window, operand 0, single buffered']
    %6 = vsyncpa [#allocation3], 0
    %7 = vsyncpa [#allocation4], 0
    // Predicated region
    $region2: #{tpu_custom_call.1} parent=1 // pred_check
      _
    $region3: #{tpu_custom_call.1} parent=1 // pred_check_branch
      %9 = sbr.rel (0) target = $region5
    $region4: #{tpu_custom_call.1} parent=1 // pred_region
      %11 = vsyncadd [#allocation3], 0
      %s12 = sshll.u32 %s0, 4
      %s13 = int_to_ptr.hbm [resolvable:$true] %s12
      %s14 = sshll.u32 [#allocation2], 4
      %s15 = int_to_ptr.vmem [resolvable:$true] %s14
      %20 = dma.hbm_to_vmem [thread:$0]  %s13, 256, %s15, [#allocation3], 128, 128, 8
    $region5: #{tpu_custom_call.1} parent=1 // pred_fallthru
      _
    // Predicated region
    $region6: #{tpu_custom_call.1} parent=1 // pred_check
      _
    $region7: #{tpu_custom_call.1} parent=1 // pred_check_branch
      %22 = sbr.rel (0) target = $region9
    $region8: #{tpu_custom_call.1} parent=1 // pred_region
      %24 = dma.done [#allocation3], 256
    $region9: #{tpu_custom_call.1} parent=1 // pred_fallthru
      _
    %v25 = vld [vmem:[#allocation2] sm:$0xff]
    %v26 = vld [vmem:[#allocation2 + $0x8] sm:$0xff]
    %v27 = vadd.f32 %v25, 2.0
    %v28 = vadd.f32 %v26, 2.0
    %v29 = vmul.f32 %v27, 3.0
    %v30 = vmul.f32 %v28, 3.0
    %v31 = vmul.f32 %v29, %v29
    %v32 = vmul.f32 %v30, %v30
    %33 = vst [vmem:[#allocation5] sm:$0xff] %v31
    %34 = vst [vmem:[#allocation5 + $0x8] sm:$0xff] %v32
    // Predicated region
    $region10: #{tpu_custom_call.1} parent=1 // pred_check
      _
    $region11: #{tpu_custom_call.1} parent=1 // pred_check_branch
      %36 = sbr.rel (0) target = $region13
    $region12: #{tpu_custom_call.1} parent=1 // pred_region
      %38 = vsyncadd [#allocation4], 0
      %s39 = sshll.u32 [#allocation5], 4
      %s40 = int_to_ptr.vmem [resolvable:$true] %s39
      %s41 = sshll.u32 %s1, 4
      %s42 = int_to_ptr.hbm [resolvable:$true] %s41
      %47 = dma.vmem_to_hbm [thread:$0]  %s40, 256, %s42, [#allocation4], 128, 128, 8
    $region13: #{tpu_custom_call.1} parent=1 // pred_fallthru
      _
    // Predicated region
    $region14: #{tpu_custom_call.1} parent=1 // pred_check
      _
    $region15: #{tpu_custom_call.1} parent=1 // pred_check_branch
      %49 = sbr.rel (0) target = $region17
    $region16: #{tpu_custom_call.1} parent=1 // pred_region
      %51 = dma.done [#allocation4], 256
    $region17: #{tpu_custom_call.1} parent=1 // pred_fallthru
      _
    %52 = vsyncpa [#allocation3], 1
    %53 = vsyncpa [#allocation4], 1

</llo_original>
